<compile_context>
chip_gen: v6e
topology: v6e:2x2x1
jax: 0.10.0
libtpu: 0.0.40
codegen_flags: <defaults>
</compile_context>

<pallas_src>
import functools

import jax
import jax.numpy as jnp
import numpy as np
from jax.experimental import pallas as pl
from jax.experimental.pallas import tpu as pltpu


# ----------------------------------------------------------------------------
# Kernels.  Natural layout: predictions (row_tile, C), durations (1, row_tile).
# Softmax reduces over the minor (class) axis; rows are independent, so the
# ragged last grid block (garbage tail, masked writes) is safe.
# ----------------------------------------------------------------------------
def _linear_kernel(gate_ref, pp_ref, ap_ref, pd_ref, ad_ref,
                   lab_ref, dur_ref, *, e1, e2, use_sqrt, eps):
    p = pp_ref[...].astype(jnp.float32)
    a = ap_ref[...].astype(jnp.float32)
    if use_sqrt:                     # alpha == 1: p^0.5 * a^0.5 == sqrt(p*a)
        z = jnp.sqrt(jnp.maximum(p * a, 0.0))
    else:                            # geometric mean in log space (3 EUP ops)
        z = jnp.exp(e1 * jnp.log(jnp.maximum(p, eps)) +
                    e2 * jnp.log(jnp.maximum(a, eps)))
    # z in (0, 1] for probability-like predictions -> exp cannot overflow, so
    # the softmax max-subtraction (cross-lane reduce + subtract) is skipped.
    e = jnp.exp(z)
    inv = pl.reciprocal(jnp.sum(e, axis=-1, keepdims=True), approx=True)
    lab_ref[...] = (e * inv).astype(lab_ref.dtype)

    pd = pd_ref[...].astype(jnp.float32)
    ad = ad_ref[...].astype(jnp.float32)
    if use_sqrt:
        comb = jnp.sqrt(jnp.maximum(pd * ad, 0.0))
    else:
        comb = jnp.exp(e1 * jnp.log(jnp.maximum(pd, eps)) +
                       e2 * jnp.log(jnp.maximum(ad, eps)))
    # gate == 1 iff min(prim_dur) > 1e-3 and min(ancl_dur) > 1e-3 (GLOBAL mins
    # computed wrapper-side so tiling preserves the torch semantics).
    dur_ref[...] = jnp.where(gate_ref[0] > 0, comb, ad).astype(dur_ref.dtype)


def _comb_kernel(wb_ref, pp_ref, ap_ref, pd_ref, ad_ref, lab_ref, dur_ref):
    # wb = [w1_prim, w1_ancl, b1, w2_prim, w2_ancl, b2]   (comb1 then comb2).
    w1p = wb_ref[0]
    w1a = wb_ref[1]
    b1 = wb_ref[2]
    w2p = wb_ref[3]
    w2a = wb_ref[4]
    b2 = wb_ref[5]
    p = pp_ref[...].astype(jnp.float32)
    a = ap_ref[...].astype(jnp.float32)
    # Linear(2,1)+ReLU degenerates to an FMA — keep it on the VPU (no MXU).
    z = jnp.maximum(w1p * p + w1a * a + b1, 0.0)
    # Inputs are unconstrained here, keep the max-subtraction (EUP is idle in
    # this branch anyway).
    e = jnp.exp(z - jnp.max(z, axis=-1, keepdims=True))
    inv = pl.reciprocal(jnp.sum(e, axis=-1, keepdims=True), approx=True)
    lab_ref[...] = (e * inv).astype(lab_ref.dtype)

    pd = pd_ref[...].astype(jnp.float32)
    ad = ad_ref[...].astype(jnp.float32)
    dur_ref[...] = jnp.maximum(w2p * pd + w2a * ad + b2,
                               0.0).astype(dur_ref.dtype)


# ----------------------------------------------------------------------------
# Tiling plan + fused pallas_call wrapper
# ----------------------------------------------------------------------------
def _plan_rows(n, c, itemsize, budget_bytes=20 << 20, cap=16384):
    """Rows of the (n, C) prediction arrays processed per grid step.

    Double-buffered VMEM working set per row = 2 * (3 label streams lane-
    padded to ceil(C/128)*128 + 3 duration streams sublane-padded to 8).
    Keep it under `budget_bytes` (safe on v5e/v6e/v7x once vmem_limit_bytes
    is raised) and under `cap`.  The returned tile is either the full n
    (tiny inputs) or a multiple of 128, which satisfies both the sublane
    rule for the (row_tile, C) label blocks and the lane rule for the
    (1, row_tile) duration blocks.
    """
    cap = max(128, cap // 128 * 128)
    lanes = pl.cdiv(c, 128) * 128                    # VMEM lane padding of C
    per_row = 2 * (3 * lanes + 3 * 8) * itemsize
    max_rows = min(cap, max(128, (budget_bytes // per_row) // 128 * 128))
    if n <= 256:
        return int(n)                                # one full block
    # Force >= 2 grid steps so v7x's second TensorCore gets work; extra
    # grid steps are ~0.35 us each on v5e/v6e (noise).
    two_steps = pl.cdiv(pl.cdiv(n, 2), 128) * 128
    return int(min(max_rows, two_steps))


def _fused_call(kernel, smem_arg, pp, ap, pd, ad, row_tile):
    n, C = pp.shape
    dtype = pp.dtype
    lab_spec = pl.BlockSpec((row_tile, C), lambda i: (i, 0))
    dur_spec = pl.BlockSpec((1, row_tile), lambda i: (0, i))
    return pl.pallas_call(
        kernel,
        out_shape=(jax.ShapeDtypeStruct((n, C), dtype),
                   jax.ShapeDtypeStruct((1, n), dtype)),
        grid=(pl.cdiv(n, row_tile),),                # ragged last block OK
        in_specs=[pl.BlockSpec(memory_space=pltpu.MemorySpace.SMEM),
                  lab_spec, lab_spec, dur_spec, dur_spec],
        out_specs=(lab_spec, dur_spec),
        compiler_params=pltpu.CompilerParams(
            dimension_semantics=("parallel",),       # megacore-shardable
            vmem_limit_bytes=40 << 20),              # > v5e's 16 MiB default
    )(smem_arg, pp, ap, pd, ad)


# ----------------------------------------------------------------------------
# Forward passes (jitted; only free contiguous reshapes outside the kernel)
# ----------------------------------------------------------------------------
@functools.partial(jax.jit, static_argnames=("alpha", "row_cap"))
def linear_forward(prim_pred, ancl_pred, prim_duration, ancl_duration,
                   alpha, row_cap=16384):
    B, T, C = prim_pred.shape
    n = B * T
    pp = prim_pred.reshape(n, C)                     # free, row-major
    ap = ancl_pred.reshape(n, C)
    pd = prim_duration.reshape(1, n)
    ad = ancl_duration.reshape(1, n)
    gate = (jnp.minimum(jnp.min(prim_duration), jnp.min(ancl_duration))
            > 0.001).astype(jnp.int32).reshape(1)
    row_tile = _plan_rows(n, C, jnp.dtype(prim_pred.dtype).itemsize,
                          cap=row_cap)
    e1 = 1.0 / (alpha + 1.0)
    e2 = alpha / (alpha + 1.0)
    kern = functools.partial(_linear_kernel, e1=e1, e2=e2,
                             use_sqrt=(alpha == 1.0), eps=1e-30)
    lab, dur = _fused_call(kern, gate, pp, ap, pd, ad, row_tile)
    return lab.reshape(B, T, C), dur.reshape(B, T)


@functools.partial(jax.jit, static_argnames=("row_cap",))
def comb_forward(wb, prim_pred, ancl_pred, prim_duration, ancl_duration,
                 row_cap=16384):
    B, T, C = prim_pred.shape
    n = B * T
    pp = prim_pred.reshape(n, C)
    ap = ancl_pred.reshape(n, C)
    pd = prim_duration.reshape(1, n)
    ad = ancl_duration.reshape(1, n)
    row_tile = _plan_rows(n, C, jnp.dtype(prim_pred.dtype).itemsize,
                          cap=row_cap)
    lab, dur = _fused_call(_comb_kernel, wb, pp, ap, pd, ad, row_tile)
    return lab.reshape(B, T, C), dur.reshape(B, T)


# ----------------------------------------------------------------------------
# Module wrapper
# ----------------------------------------------------------------------------
class SelfCorrModel:
    """JAX/Pallas counterpart of the torch `selfcorrModel`."""

    def __init__(self, method, alpha):
        self.method = method
        self.alpha = float(alpha)
        # Deterministic init of comb1/comb2 = Linear(2,1)+ReLU, mimicking the
        # torch default U(-1/sqrt(fan_in), 1/sqrt(fan_in)).  Packed as
        # [w_prim, w_ancl, bias] per layer (comb1 then comb2) for SMEM reads.
        key = jax.random.PRNGKey(42)
        k1, k2, k3, k4 = jax.random.split(key, 4)
        bound = float(1.0 / np.sqrt(2.0))
        w1 = jax.random.uniform(k1, (2,), jnp.float32, -bound, bound)
        b1 = jax.random.uniform(k2, (1,), jnp.float32, -bound, bound)
        w2 = jax.random.uniform(k3, (2,), jnp.float32, -bound, bound)
        b2 = jax.random.uniform(k4, (1,), jnp.float32, -bound, bound)
        self.wb = jnp.concatenate([w1, b1, w2, b2])

    def __call__(self, prim_pred, ancl_pred, prim_duration, ancl_duration):
        if self.method == "linear":
            return linear_forward(prim_pred, ancl_pred, prim_duration,
                                  ancl_duration, alpha=self.alpha)
        return comb_forward(self.wb, prim_pred, ancl_pred, prim_duration,
                            ancl_duration)


# ----------------------------------------------------------------------------
# Pure-JAX reference (mirrors the torch forward) for correctness checking
# ----------------------------------------------------------------------------
def _reference(method, alpha, wb, prim_pred, ancl_pred, prim_duration,
               ancl_duration):
    if method == "linear":
        e1 = 1.0 / (alpha + 1.0)
        e2 = alpha / (alpha + 1.0)
        lab = jax.nn.softmax(jnp.power(prim_pred, e1) *
                             jnp.power(ancl_pred, e2), axis=-1)
        gate = jnp.logical_and(jnp.min(ancl_duration) > 0.001,
                               jnp.min(prim_duration) > 0.001)
        dur = jnp.where(gate,
                        jnp.power(prim_duration, e1) *
                        jnp.power(ancl_duration, e2),
                        ancl_duration)
        return lab, dur
    w1p, w1a, b1, w2p, w2a, b2 = (wb[i] for i in range(6))
    lab = jax.nn.softmax(
        jnp.maximum(w1p * prim_pred + w1a * ancl_pred + b1, 0.0), axis=-1)
    dur = jnp.maximum(w2p * prim_duration + w2a * ancl_duration + b2, 0.0)
    return lab, dur


# ----------------------------------------------------------------------------
# Demo
# ----------------------------------------------------------------------------
if __name__ == "__main__":
    B, T, C = 2, 8, 32
    key = jax.random.PRNGKey(0)
    k1, k2, k3, k4 = jax.random.split(key, 4)

    # Predictions are probability-like (positive), as in the torch pipeline.
    prim_pred = jax.nn.softmax(
        jax.random.normal(k1, (B, T, C), jnp.float32), axis=-1)
    ancl_pred = jax.nn.softmax(
        jax.random.normal(k2, (B, T, C), jnp.float32), axis=-1)
    prim_duration = jax.random.uniform(k3, (B, T), jnp.float32,
                                       minval=0.1, maxval=1.0)
    ancl_duration = jax.random.uniform(k4, (B, T), jnp.float32,
                                       minval=0.1, maxval=1.0)

    # linear method: sqrt fast path (alpha=1) and log-space path (alpha=2)
    for alpha in (1.0, 2.0):
        model = SelfCorrModel(method="linear", alpha=alpha)
        lab, dur = model(prim_pred, ancl_pred, prim_duration, ancl_duration)
        jax.block_until_ready((lab, dur))
        assert lab.shape == (B, T, C) and dur.shape == (B, T)
        rl, rd = _reference("linear", alpha, None, prim_pred, ancl_pred,
                            prim_duration, ancl_duration)
        np.testing.assert_allclose(np.asarray(lab), np.asarray(rl),
                                   rtol=2e-3, atol=2e-3)
        np.testing.assert_allclose(np.asarray(dur), np.asarray(rd),
                                   rtol=1e-4, atol=1e-5)

    # learned-combination method (comb1 / comb2)
    model_c = SelfCorrModel(method="comb", alpha=1.0)
    lab_c, dur_c = model_c(prim_pred, ancl_pred, prim_duration, ancl_duration)
    jax.block_until_ready((lab_c, dur_c))
    assert lab_c.shape == (B, T, C) and dur_c.shape == (B, T)
    rl, rd = _reference("comb", 1.0, model_c.wb, prim_pred, ancl_pred,
                        prim_duration, ancl_duration)
    np.testing.assert_allclose(np.asarray(lab_c), np.asarray(rl),
                               rtol=2e-3, atol=2e-3)
    np.testing.assert_allclose(np.asarray(dur_c), np.asarray(rd),
                               rtol=1e-4, atol=1e-5)

    # Longer sequence: exercises the forced >=2-step grid (default cap) and a
    # small-cap multi-step grid with ragged (masked) tail blocks on both the
    # label rows and the duration lanes.
    T2 = 200
    kk = jax.random.split(jax.random.PRNGKey(1), 4)
    pp2 = jax.nn.softmax(jax.random.normal(kk[0], (B, T2, C), jnp.float32),
                         axis=-1)
    ap2 = jax.nn.softmax(jax.random.normal(kk[1], (B, T2, C), jnp.float32),
                         axis=-1)
    pd2 = jax.random.uniform(kk[2], (B, T2), jnp.float32,
                             minval=0.1, maxval=1.0)
    ad2 = jax.random.uniform(kk[3], (B, T2), jnp.float32,
                             minval=0.1, maxval=1.0)
    rl2, rd2 = _reference("linear", 2.0, None, pp2, ap2, pd2, ad2)
    for cap in (16384, 128):
        lab2, dur2 = linear_forward(pp2, ap2, pd2, ad2, alpha=2.0,
                                    row_cap=cap)
        jax.block_until_ready((lab2, dur2))
        np.testing.assert_allclose(np.asarray(lab2), np.asarray(rl2),
                                   rtol=2e-3, atol=2e-3)
        np.testing.assert_allclose(np.asarray(dur2), np.asarray(rd2),
                                   rtol=1e-4, atol=1e-5)

    # TODO(synk): on v7x the alpha!=1 linear path can become EUP-bound at
    # small class counts (C<128 lanes); an in-kernel XLU transpose to a
    # lane-dense [C, rows] compute layout would recover it but is not lowered
    # robustly for non-128-multiple class counts, so the natural layout is
    # kept for portability.
    print("KERNEL_OK")
</pallas_src>

<mosaic_0001>
module attributes {stable_mosaic.version = 11 : i64} {
  func.func @_linear_kernel(%arg0: i32, %arg1: memref<1xi32, #tpu.memory_space<smem>>, %arg2: memref<16x32xf32, #tpu.memory_space<vmem>>, %arg3: memref<16x32xf32, #tpu.memory_space<vmem>>, %arg4: memref<1x16xf32, #tpu.memory_space<vmem>>, %arg5: memref<1x16xf32, #tpu.memory_space<vmem>>, %arg6: memref<16x32xf32, #tpu.memory_space<vmem>>, %arg7: memref<1x16xf32, #tpu.memory_space<vmem>>) attributes {dimension_semantics = [#tpu.dimension_semantics<parallel>], iteration_bounds = array<i64: 1>, scalar_prefetch = 0 : i64, scratch_operands = 0 : i64, tpu.core_type = #tpu.core_type<tc>, window_params = [{transform_indices = @transform_0, window_bounds = array<i64: 1>}, {transform_indices = @transform_1, window_bounds = array<i64: 16, 32>}, {transform_indices = @transform_2, window_bounds = array<i64: 16, 32>}, {transform_indices = @transform_3, window_bounds = array<i64: 1, 16>}, {transform_indices = @transform_4, window_bounds = array<i64: 1, 16>}, {transform_indices = @transform_5, window_bounds = array<i64: 16, 32>}, {transform_indices = @transform_6, window_bounds = array<i64: 1, 16>}]} {
    %c0 = arith.constant 0 : index
    %c0_0 = arith.constant 0 : index
    %0 = vector.load %arg2[%c0, %c0_0] : memref<16x32xf32, #tpu.memory_space<vmem>>, vector<16x32xf32>
    %c0_1 = arith.constant 0 : index
    %c0_2 = arith.constant 0 : index
    %1 = vector.load %arg3[%c0_1, %c0_2] : memref<16x32xf32, #tpu.memory_space<vmem>>, vector<16x32xf32>
    %2 = arith.mulf %0, %1 : vector<16x32xf32>
    %cst = arith.constant 0.000000e+00 : f32
    %3 = vector.broadcast %cst : f32 to vector<16x32xf32>
    %4 = arith.maximumf %2, %3 : vector<16x32xf32>
    %5 = math.sqrt %4 : vector<16x32xf32>
    %6 = math.exp %5 : vector<16x32xf32>
    %cst_3 = arith.constant dense<0.000000e+00> : vector<16xf32>
    %7 = vector.multi_reduction <add>, %6, %cst_3 [1] : vector<16x32xf32> to vector<16xf32>
    %8 = vector.shape_cast %7 : vector<16xf32> to vector<16x1xf32>
    %9 = tpu.reciprocal %8 {approx = true} : vector<16x1xf32> -> vector<16x1xf32>
    %10 = vector.broadcast %9 : vector<16x1xf32> to vector<16x32xf32>
    %11 = arith.mulf %6, %10 : vector<16x32xf32>
    %c0_4 = arith.constant 0 : index
    %c0_5 = arith.constant 0 : index
    %12 = vector.load %arg6[%c0_4, %c0_5] : memref<16x32xf32, #tpu.memory_space<vmem>>, vector<16x32xf32>
    tpu.vector_store %arg6[%c0_4, %c0_5], %11 {strides = array<i32>} : memref<16x32xf32, #tpu.memory_space<vmem>>, vector<16x32xf32>,
    %c0_6 = arith.constant 0 : index
    %c0_7 = arith.constant 0 : index
    %13 = vector.load %arg4[%c0_6, %c0_7] : memref<1x16xf32, #tpu.memory_space<vmem>>, vector<1x16xf32>
    %c0_8 = arith.constant 0 : index
    %c0_9 = arith.constant 0 : index
    %14 = vector.load %arg5[%c0_8, %c0_9] : memref<1x16xf32, #tpu.memory_space<vmem>>, vector<1x16xf32>
    %15 = arith.mulf %13, %14 : vector<1x16xf32>
    %cst_10 = arith.constant 0.000000e+00 : f32
    %16 = vector.broadcast %cst_10 : f32 to vector<1x16xf32>
    %17 = arith.maximumf %15, %16 : vector<1x16xf32>
    %18 = math.sqrt %17 : vector<1x16xf32>
    %c0_11 = arith.constant 0 : index
    %19 = memref.load %arg1[%c0_11] : memref<1xi32, #tpu.memory_space<smem>>
    %c0_i32 = arith.constant 0 : i32
    %20 = arith.cmpi sgt, %19, %c0_i32 : i32
    %21 = arith.select %20, %18, %14 : vector<1x16xf32>
    %c0_12 = arith.constant 0 : index
    %c0_13 = arith.constant 0 : index
    %22 = vector.load %arg7[%c0_12, %c0_13] : memref<1x16xf32, #tpu.memory_space<vmem>>, vector<1x16xf32>
    tpu.vector_store %arg7[%c0_12, %c0_13], %21 {strides = array<i32>} : memref<1x16xf32, #tpu.memory_space<vmem>>, vector<1x16xf32>,
    return
  }
  func.func @transform_0(%arg0: i32) -> i32 {
    %c0_i32 = arith.constant 0 : i32
    %c0_i32_0 = arith.constant 0 : i32
    return %c0_i32 : i32
  }
  func.func @transform_1(%arg0: i32) -> (i32, i32) {
    %c0_i32 = arith.constant 0 : i32
    %c0_i32_0 = arith.constant 0 : i32
    return %arg0, %c0_i32 : i32, i32
  }
  func.func @transform_2(%arg0: i32) -> (i32, i32) {
    %c0_i32 = arith.constant 0 : i32
    %c0_i32_0 = arith.constant 0 : i32
    return %arg0, %c0_i32 : i32, i32
  }
  func.func @transform_3(%arg0: i32) -> (i32, i32) {
    %c0_i32 = arith.constant 0 : i32
    %c0_i32_0 = arith.constant 0 : i32
    return %c0_i32, %arg0 : i32, i32
  }
  func.func @transform_4(%arg0: i32) -> (i32, i32) {
    %c0_i32 = arith.constant 0 : i32
    %c0_i32_0 = arith.constant 0 : i32
    return %c0_i32, %arg0 : i32, i32
  }
  func.func @transform_5(%arg0: i32) -> (i32, i32) {
    %c0_i32 = arith.constant 0 : i32
    %c0_i32_0 = arith.constant 0 : i32
    return %arg0, %c0_i32 : i32, i32
  }
  func.func @transform_6(%arg0: i32) -> (i32, i32) {
    %c0_i32 = arith.constant 0 : i32
    %c0_i32_0 = arith.constant 0 : i32
    return %c0_i32, %arg0 : i32, i32
  }
}

</mosaic_0001>

<llo_original>
// kernel: linear_forward.1
$region0: #{linear_forward.1}
  #allocation0 [shape = 'u32[]', space=smem, size = 0x4, offset = 0x4, fixed_abs, tag = 'smem constant byte address 0x4 - core index']
  #allocation1 [shape = 'u32[144,128]{1,0:T(1,128)}', space=vmem, size = 0x12000, scoped, tag = 'internal scratch']
  #allocation2 [shape = 's32[1]{0:T(128)S(6)}', space=smem, size = 0x200, scoped, tag = 'scoped memory for linear_forward.1']
  %s0 = inlined_call_operand.<no memory space> [shape: s32[1], index: 0, kind: input, shape index: {}]
  %s1 = inlined_call_operand.vmem [shape: f32[16,32], index: 1, kind: input, shape index: {}]
  %s2 = inlined_call_operand.hbm [shape: f32[16,32], index: 2, kind: input, shape index: {}]
  %s3 = inlined_call_operand.vmem [shape: f32[1,16], index: 3, kind: input, shape index: {}]
  %s4 = inlined_call_operand.vmem [shape: f32[1,16], index: 4, kind: input, shape index: {}]
  %s5 = inlined_call_operand.hbm [shape: f32[16,32], index: 5, kind: output, shape index: {0}]
  %s6 = inlined_call_operand.vmem [shape: f32[1,16], index: 6, kind: output, shape index: {1}]
  %7 = xla_tuple %s5, %s6
  %s8 = sld [smem:[#allocation0]]
  $region42: #{linear_forward.1} parent=0
    _
  %s10 = ssub.s32 1, %s8
  %s11 = scalar_select 0, %s10, %s8
  %12 = sst [smem:[#allocation2]] %s0
  $region1: #{linear_forward.1} parent=0
    #allocation3 [shape = 'u8[8192]{0}', space=vmem, size = 0x2000, scoped, tag = 'input window, operand 2, single buffered']
    #allocation4 [shape = 's32[1]{0}', space=sflag, size = 0x4, scoped, tag = 'scoped memory for linear_forward.1']
    #allocation5 [shape = 's32[1]{0}', space=sflag, size = 0x4, scoped, tag = 'scoped memory for linear_forward.1']
    #allocation6 [shape = 'u8[8192]{0}', space=vmem, size = 0x2000, scoped, tag = 'output window, operand 0, single buffered']
    %13 = vsyncpa [#allocation4], 0
    %14 = vsyncpa [#allocation5], 0
    // Predicated region
    $region2: #{linear_forward.1} parent=1 // pred_check
      _
    $region3: #{linear_forward.1} parent=1 // pred_check_branch
      %16 = sbr.rel (0) target = $region5
    $region4: #{linear_forward.1} parent=1 // pred_region
      _
    $region5: #{linear_forward.1} parent=1 // pred_fallthru
      _
    // Predicated region
    $region6: #{linear_forward.1} parent=1 // pred_check
      _
    $region7: #{linear_forward.1} parent=1 // pred_check_branch
      %18 = sbr.rel (0) target = $region9
    $region8: #{linear_forward.1} parent=1 // pred_region
      _
    $region9: #{linear_forward.1} parent=1 // pred_fallthru
      _
    // Predicated region
    $region10: #{linear_forward.1} parent=1 // pred_check
      _
    $region11: #{linear_forward.1} parent=1 // pred_check_branch
      %20 = sbr.rel (0) target = $region13
    $region12: #{linear_forward.1} parent=1 // pred_region
      %s22 = ssub.s32 256, 256
      %23 = vsyncadd [#allocation4], %s22
      %s24 = sshll.u32 [#allocation3], 4
      %s25 = int_to_ptr.vmem [resolvable:$true] %s24
      %30 = dma.hbm_to_vmem [thread:$0]  %s2, 256, %s25, [#allocation4], 128, 128, 8
    $region13: #{linear_forward.1} parent=1 // pred_fallthru
      _
    // Predicated region
    $region14: #{linear_forward.1} parent=1 // pred_check
      _
    $region15: #{linear_forward.1} parent=1 // pred_check_branch
      %32 = sbr.rel (0) target = $region17
    $region16: #{linear_forward.1} parent=1 // pred_region
      _
    $region17: #{linear_forward.1} parent=1 // pred_fallthru
      _
    // Predicated region
    $region18: #{linear_forward.1} parent=1 // pred_check
      _
    $region19: #{linear_forward.1} parent=1 // pred_check_branch
      %34 = sbr.rel (0) target = $region21
    $region20: #{linear_forward.1} parent=1 // pred_region
      _
    $region21: #{linear_forward.1} parent=1 // pred_fallthru
      _
    // Predicated region
    $region22: #{linear_forward.1} parent=1 // pred_check
      _
    $region23: #{linear_forward.1} parent=1 // pred_check_branch
      %36 = sbr.rel (0) target = $region25
    $region24: #{linear_forward.1} parent=1 // pred_region
      %37 = dma.done [#allocation4], 256
    $region25: #{linear_forward.1} parent=1 // pred_fallthru
      _
    %v38 = vld [vmem:[%s1] sm:$0xff]
    %v39 = vld [vmem:[%s1 + $0x8] sm:$0xff]
    %v40 = vld [vmem:[#allocation3] sm:$0xff]
    %v41 = vld [vmem:[#allocation3 + $0x8] sm:$0xff]
    %v42 = vmul.f32 %v38, %v40
    %v43 = vmul.f32 %v39, %v41
    %v44 = vmax.f32 %v42, 0.0
    %v45 = vmax.f32 %v43, 0.0
    %v46 = vrsqrt.pop %v44
    %v47 = vmul.f32 %v44, %v46
    %vm48 = vcmp.eq.f32.partialorder %v44, inf
    %v49 = vsel %vm48, %v44, %v47
    %vm50 = vcmp.eq.f32.partialorder %v44, 0.0
    %v51 = vand.u32 %v44, 2147483648
    %v52 = vsel %vm50, %v51, %v49
    %v53 = vrsqrt.pop %v45
    %v54 = vmul.f32 %v45, %v53
    %vm55 = vcmp.eq.f32.partialorder %v45, inf
    %v56 = vsel %vm55, %v45, %v54
    %vm57 = vcmp.eq.f32.partialorder %v45, 0.0
    %v58 = vand.u32 %v45, 2147483648
    %v59 = vsel %vm57, %v58, %v56
    %v60 = vmul.f32 %v52, 1.442695
    %v61 = vpow.pop %v60
    %v62 = vmul.f32 %v59, 1.442695
    %v63 = vpow.pop %v62
    %vm64 = vcmask 261120
    %v65 = vsel %vm64, %v61, 0.0
    %66 = vadd.xlane.f32.xlu0 %v65
    %v67 = vpop.xlane.xlu0 %66
    %v68 = vsel %vm64, %v63, 0.0
    %69 = vadd.xlane.f32.xlu0 %v68
    %v70 = vpop.xlane.xlu0 %69
    %v71 = vrcp.pop %v67
    %v72 = vrcp.pop %v70
    %v73 = vmul.f32 %v61, %v71
    %v74 = vmul.f32 %v63, %v72
    %75 = vst.msk [vmem:[#allocation6] sm:$0xff] %vm64, %v73
    %76 = vst.msk [vmem:[#allocation6 + $0x8] sm:$0xff] %vm64, %v74
    %v77 = vld [vmem:[%s3] sm:$0x1]
    %v78 = vld [vmem:[%s4] sm:$0x1]
    %v79 = vmul.f32 %v77, %v78
    %v80 = vmax.f32 %v79, 0.0
    %v81 = vrsqrt.pop %v80
    %v82 = vmul.f32 %v80, %v81
    %vm83 = vcmp.eq.f32.partialorder %v80, inf
    %v84 = vsel %vm83, %v80, %v82
    %vm85 = vcmp.eq.f32.partialorder %v80, 0.0
    %v86 = vand.u32 %v80, 2147483648
    %v87 = vsel %vm85, %v86, %v84
    %s88 = sld [smem:[#allocation2]]
    %p89 = scmp.gt.s32.totalorder %s88, 0
    %s90 = scalar_select %p89, 1, 0
    %v91 = vstv %s90
    %vm92 = vcmp.eq.s32.totalorder %v91, 1
    %v93 = vsel %vm92, %v87, %v78
    %vm94 = vcmask 122880
    %95 = vst.msk [vmem:[%s6] sm:$0x1] %vm94, %v93
    // Predicated region
    $region26: #{linear_forward.1} parent=1 // pred_check
      _
    $region27: #{linear_forward.1} parent=1 // pred_check_branch
      %97 = sbr.rel (0) target = $region29
    $region28: #{linear_forward.1} parent=1 // pred_region
      %s99 = ssub.s32 256, 256
      %100 = vsyncadd [#allocation5], %s99
      %s101 = sshll.u32 [#allocation6], 4
      %s102 = int_to_ptr.vmem [resolvable:$true] %s101
      %107 = dma.vmem_to_hbm [thread:$0]  %s102, 256, %s5, [#allocation5], 128, 128, 8
    $region29: #{linear_forward.1} parent=1 // pred_fallthru
      _
    // Predicated region
    $region30: #{linear_forward.1} parent=1 // pred_check
      _
    $region31: #{linear_forward.1} parent=1 // pred_check_branch
      %109 = sbr.rel (0) target = $region33
    $region32: #{linear_forward.1} parent=1 // pred_region
      _
    $region33: #{linear_forward.1} parent=1 // pred_fallthru
      _
    // Predicated region
    $region34: #{linear_forward.1} parent=1 // pred_check
      _
    $region35: #{linear_forward.1} parent=1 // pred_check_branch
      %111 = sbr.rel (0) target = $region37
    $region36: #{linear_forward.1} parent=1 // pred_region
      %112 = dma.done [#allocation5], 256
    $region37: #{linear_forward.1} parent=1 // pred_fallthru
      _
    // Predicated region
    $region38: #{linear_forward.1} parent=1 // pred_check
      _
    $region39: #{linear_forward.1} parent=1 // pred_check_branch
      %114 = sbr.rel (0) target = $region41
    $region40: #{linear_forward.1} parent=1 // pred_region
      _
    $region41: #{linear_forward.1} parent=1 // pred_fallthru
      _
    %115 = vsyncpa [#allocation4], 1
    %116 = vsyncpa [#allocation5], 1

</llo_original>
